<compile_context>
chip_gen: v7x
topology: tpu7x:2x2x1
jax: 0.10.0
libtpu: 0.0.40
codegen_flags: <defaults>
</compile_context>

<pallas_src>
import functools

import jax
import jax.numpy as jnp
from jax import lax
from jax.experimental import pallas as pl
from jax.experimental.pallas import tpu as pltpu


EPS = 1e-5          # PyTorch InstanceNorm2d default
NEG_SLOPE = 0.2     # LeakyReLU(0.2)
_VMEM_LIMIT = 48 * 1024 * 1024   # fits v5e/v6e (128 MiB) and v7x (64 MiB per TC)


def _default_tile_rows():
    """HWo tile rows: smaller on v7x (64 MiB VMEM / TC), larger elsewhere."""
    try:
        kind = jax.devices()[0].device_kind.lower()
    except Exception:
        kind = ""
    return 256 if "v7" in kind else 512


_TILE_ROWS = _default_tile_rows()


def _round_up(x, m):
    return (x + m - 1) // m * m


# ----------------------------------------------------------------------------
# Pass 1: conv (MXU matmul) + per-(batch, channel) sum / sum-of-squares.
# ----------------------------------------------------------------------------
def _conv_stats_kernel(p_ref, w_ref, y_ref, stats_ref):
    # p_ref: (t_rows, CK2p)  w_ref: (CK2p, Coutp)
    # y_ref: (t_rows, Coutp) f32   stats_ref: (2, Coutp) f32 (resident accumulator)
    t = pl.program_id(1)

    y = jnp.dot(p_ref[...], w_ref[...], preferred_element_type=jnp.float32)
    y_ref[...] = y

    s = jnp.sum(y, axis=0, keepdims=True)          # (1, Coutp)
    ss = jnp.sum(y * y, axis=0, keepdims=True)     # (1, Coutp)
    part = jnp.concatenate([s, ss], axis=0)        # (2, Coutp)

    @pl.when(t == 0)
    def _():
        stats_ref[...] = jnp.zeros_like(stats_ref)

    stats_ref[...] += part


# ----------------------------------------------------------------------------
# Pass 2: fused normalize + affine + LeakyReLU (single elementwise sweep).
# ----------------------------------------------------------------------------
def _norm_act_kernel(y_ref, stats_ref, g_ref, b_ref, o_ref, *, inv_count):
    # y_ref: (t_rows, Coutp) f32   stats_ref: (2, Coutp) f32
    # g_ref/b_ref: (1, Coutp) f32  o_ref: (t_rows, Coutp)
    stats = stats_ref[...]
    mean = stats[0:1, :] * inv_count                       # E[y]
    ex2 = stats[1:2, :] * inv_count                        # E[y^2]
    var = jnp.maximum(ex2 - mean * mean, 0.0)              # biased var (PyTorch)
    inv_std = lax.rsqrt(var + EPS)                         # EUP slot
    scale = g_ref[...] * inv_std                           # (1, Coutp)
    shift = b_ref[...] - mean * scale

    z = y_ref[...] * scale + shift                         # one fused FMA sweep
    o_ref[...] = jnp.where(z >= 0, z, NEG_SLOPE * z).astype(o_ref.dtype)


# ----------------------------------------------------------------------------
# Wrapper
# ----------------------------------------------------------------------------
@functools.partial(jax.jit, static_argnames=("stride", "compute_dtype"))
def cnn_block(x, weight, gamma, beta, stride, compute_dtype=jnp.bfloat16):
    """x: (N, Cin, H, W). weight: (Cout, Cin, 4, 4). Returns (N, Cout, Ho, Wo)."""
    N, Cin, H, W = x.shape
    Cout, _, K, _ = weight.shape
    Ho = (H - K) // stride + 1
    Wo = (W - K) // stride + 1
    HWo = Ho * Wo
    CK2 = Cin * K * K

    # --- build patches directly in (N, HWo, K*K*Cin) order (no big transpose) ---
    x_nhwc = jnp.transpose(x, (0, 2, 3, 1))                      # (N, H, W, Cin)
    cols = []
    for i in range(K):
        for j in range(K):
            cols.append(x_nhwc[:, i:i + stride * Ho:stride,
                               j:j + stride * Wo:stride, :])     # (N, Ho, Wo, Cin)
    patches = jnp.stack(cols, axis=3).reshape(N, HWo, K * K * Cin)

    # weight (Cout, Cin, K, K) -> (K*K*Cin, Cout) to match patch column ordering
    w2d = jnp.transpose(weight, (2, 3, 1, 0)).reshape(K * K * Cin, Cout)

    # --- pad to MXU/lane-friendly shapes ---
    CKp = _round_up(CK2, 128)           # full MXU contraction depth
    Cop = _round_up(Cout, 128)          # lane-dense output last dim
    t_rows = min(_TILE_ROWS, _round_up(HWo, 8))
    HWp = _round_up(HWo, t_rows)
    n_tiles = HWp // t_rows

    # zero padding: padded rows/cols contribute exactly 0 to the conv and to the
    # sum / sum-of-squares accumulators, so stats stay exact (divide by true HWo).
    patches = jnp.pad(patches, ((0, 0), (0, HWp - HWo), (0, CKp - CK2)))
    patches = patches.astype(compute_dtype)
    w2d = jnp.pad(w2d, ((0, CKp - CK2), (0, Cop - Cout))).astype(compute_dtype)
    g2d = jnp.pad(gamma.reshape(1, Cout).astype(jnp.float32),
                  ((0, 0), (0, Cop - Cout)), constant_values=1.0)
    b2d = jnp.pad(beta.reshape(1, Cout).astype(jnp.float32),
                  ((0, 0), (0, Cop - Cout)))

    # --- pass 1: conv + stats -------------------------------------------------
    y, stats = pl.pallas_call(
        _conv_stats_kernel,
        out_shape=(jax.ShapeDtypeStruct((N, HWp, Cop), jnp.float32),
                   jax.ShapeDtypeStruct((N, 2, Cop), jnp.float32)),
        grid_spec=pltpu.PrefetchScalarGridSpec(
            num_scalar_prefetch=0,
            grid=(N, n_tiles),
            in_specs=[
                pl.BlockSpec((pl.Squeezed(), t_rows, CKp), lambda n, t: (n, t, 0)),
                pl.BlockSpec((CKp, Cop), lambda n, t: (0, 0)),
            ],
            out_specs=(
                pl.BlockSpec((pl.Squeezed(), t_rows, Cop), lambda n, t: (n, t, 0)),
                pl.BlockSpec((pl.Squeezed(), 2, Cop), lambda n, t: (n, 0, 0)),
            ),
        ),
        compiler_params=pltpu.CompilerParams(
            dimension_semantics=("parallel", "arbitrary"),
            vmem_limit_bytes=_VMEM_LIMIT),
    )(patches, w2d)

    # --- pass 2: fused normalize + affine + LeakyReLU --------------------------
    out_p = pl.pallas_call(
        functools.partial(_norm_act_kernel, inv_count=1.0 / HWo),
        out_shape=jax.ShapeDtypeStruct((N, HWp, Cop), x.dtype),
        grid_spec=pltpu.PrefetchScalarGridSpec(
            num_scalar_prefetch=0,
            grid=(N, n_tiles),
            in_specs=[
                pl.BlockSpec((pl.Squeezed(), t_rows, Cop), lambda n, t: (n, t, 0)),
                pl.BlockSpec((pl.Squeezed(), 2, Cop), lambda n, t: (n, 0, 0)),
                pl.BlockSpec((1, Cop), lambda n, t: (0, 0)),
                pl.BlockSpec((1, Cop), lambda n, t: (0, 0)),
            ],
            out_specs=pl.BlockSpec((pl.Squeezed(), t_rows, Cop),
                                   lambda n, t: (n, t, 0)),
        ),
        compiler_params=pltpu.CompilerParams(
            dimension_semantics=("parallel", "parallel"),
            vmem_limit_bytes=_VMEM_LIMIT),
    )(y, stats, g2d, b2d)

    out = out_p[:, :HWo, :Cout].reshape(N, Ho, Wo, Cout)
    # TODO(synk): consumers that accept NHWC could skip this final HBM transpose.
    return jnp.transpose(out, (0, 3, 1, 2))


# ----------------------------------------------------------------------------
# Plain-JAX reference (same semantics as the PyTorch module).
# ----------------------------------------------------------------------------
def _reference(x, weight, gamma, beta, stride):
    y = lax.conv_general_dilated(
        x, weight, window_strides=(stride, stride), padding="VALID",
        dimension_numbers=("NCHW", "OIHW", "NCHW"))
    mean = y.mean(axis=(2, 3), keepdims=True)
    var = ((y - mean) ** 2).mean(axis=(2, 3), keepdims=True)
    y = (y - mean) * lax.rsqrt(var + EPS)
    y = y * gamma.reshape(1, -1, 1, 1) + beta.reshape(1, -1, 1, 1)
    return jnp.where(y >= 0, y, NEG_SLOPE * y)


if __name__ == "__main__":
    key = jax.random.PRNGKey(0)
    k_x, k_w = jax.random.split(key)

    N, Cin, H, W = 2, 4, 16, 16
    Cout, K, stride = 8, 4, 2

    x = jax.random.normal(k_x, (N, Cin, H, W), dtype=jnp.float32)
    fan_in = Cin * K * K
    weight = jax.random.normal(k_w, (Cout, Cin, K, K),
                               dtype=jnp.float32) / jnp.sqrt(fan_in)
    gamma = jnp.ones((Cout,), dtype=jnp.float32)     # InstanceNorm2d affine init
    beta = jnp.zeros((Cout,), dtype=jnp.float32)

    ref = jax.block_until_ready(_reference(x, weight, gamma, beta, stride))

    # Full-precision MXU path: tight check against the reference.
    out_f32 = jax.block_until_ready(
        cnn_block(x, weight, gamma, beta, stride=stride, compute_dtype=jnp.float32))
    assert out_f32.shape == ref.shape, (out_f32.shape, ref.shape)
    err_f32 = float(jnp.max(jnp.abs(out_f32 - ref)))
    assert jnp.allclose(out_f32, ref, atol=2e-3, rtol=2e-3), err_f32

    # bf16-fed MXU path (default perf configuration): looser tolerance.
    out_bf16 = jax.block_until_ready(
        cnn_block(x, weight, gamma, beta, stride=stride, compute_dtype=jnp.bfloat16))
    assert out_bf16.shape == ref.shape, (out_bf16.shape, ref.shape)
    err_bf16 = float(jnp.max(jnp.abs(out_bf16 - ref)))
    assert jnp.allclose(out_bf16, ref, atol=6e-2, rtol=6e-2), err_bf16

    print("KERNEL_OK")
</pallas_src>

<mosaic_0001>
module attributes {stable_mosaic.version = 11 : i64} {
  func.func @_norm_act_kernel(%arg0: i32, %arg1: i32, %arg2: memref<1x56x128xf32, #tpu.memory_space<vmem>>, %arg3: memref<1x2x128xf32, #tpu.memory_space<vmem>>, %arg4: memref<1x128xf32, #tpu.memory_space<vmem>>, %arg5: memref<1x128xf32, #tpu.memory_space<vmem>>, %arg6: memref<1x56x128xf32, #tpu.memory_space<vmem>>) attributes {dimension_semantics = [#tpu.dimension_semantics<parallel>, #tpu.dimension_semantics<parallel>], iteration_bounds = array<i64: 2, 1>, scalar_prefetch = 0 : i64, scratch_operands = 0 : i64, tpu.core_type = #tpu.core_type<tc>, window_params = [{transform_indices = @transform_0, window_bounds = array<i64: 1, 56, 128>}, {transform_indices = @transform_1, window_bounds = array<i64: 1, 2, 128>}, {pipeline_mode = #tpu.pipeline_mode<synchronous>, transform_indices = @transform_2, window_bounds = array<i64: 1, 128>}, {pipeline_mode = #tpu.pipeline_mode<synchronous>, transform_indices = @transform_3, window_bounds = array<i64: 1, 128>}, {transform_indices = @transform_4, window_bounds = array<i64: 1, 56, 128>}]} {
    %c0 = arith.constant 0 : index
    %c0_0 = arith.constant 0 : index
    %c0_1 = arith.constant 0 : index
    %0 = vector.load %arg3[%c0, %c0_0, %c0_1] : memref<1x2x128xf32, #tpu.memory_space<vmem>>, vector<1x2x128xf32>
    %1 = vector.shape_cast %0 : vector<1x2x128xf32> to vector<2x128xf32>
    %2 = vector.extract_strided_slice %1 {offsets = [0, 0], sizes = [1, 128], strides = [1, 1]} : vector<2x128xf32> to vector<1x128xf32>
    %cst = arith.constant 0.0204081628 : f32
    %3 = vector.broadcast %cst : f32 to vector<1x128xf32>
    %4 = arith.mulf %2, %3 : vector<1x128xf32>
    %5 = vector.extract_strided_slice %1 {offsets = [1, 0], sizes = [1, 128], strides = [1, 1]} : vector<2x128xf32> to vector<1x128xf32>
    %cst_2 = arith.constant 0.0204081628 : f32
    %6 = vector.broadcast %cst_2 : f32 to vector<1x128xf32>
    %7 = arith.mulf %5, %6 : vector<1x128xf32>
    %8 = arith.mulf %4, %4 : vector<1x128xf32>
    %9 = arith.subf %7, %8 : vector<1x128xf32>
    %cst_3 = arith.constant 0.000000e+00 : f32
    %10 = vector.broadcast %cst_3 : f32 to vector<1x128xf32>
    %11 = arith.maximumf %9, %10 : vector<1x128xf32>
    %cst_4 = arith.constant 9.99999974E-6 : f32
    %12 = vector.broadcast %cst_4 : f32 to vector<1x128xf32>
    %13 = arith.addf %11, %12 : vector<1x128xf32>
    %14 = math.rsqrt %13 : vector<1x128xf32>
    %c0_5 = arith.constant 0 : index
    %c0_6 = arith.constant 0 : index
    %15 = vector.load %arg4[%c0_5, %c0_6] : memref<1x128xf32, #tpu.memory_space<vmem>>, vector<1x128xf32>
    %16 = arith.mulf %15, %14 : vector<1x128xf32>
    %c0_7 = arith.constant 0 : index
    %c0_8 = arith.constant 0 : index
    %17 = vector.load %arg5[%c0_7, %c0_8] : memref<1x128xf32, #tpu.memory_space<vmem>>, vector<1x128xf32>
    %18 = arith.mulf %4, %16 : vector<1x128xf32>
    %19 = arith.subf %17, %18 : vector<1x128xf32>
    %c0_9 = arith.constant 0 : index
    %c0_10 = arith.constant 0 : index
    %c0_11 = arith.constant 0 : index
    %20 = vector.load %arg2[%c0_9, %c0_10, %c0_11] : memref<1x56x128xf32, #tpu.memory_space<vmem>>, vector<1x56x128xf32>
    %21 = vector.shape_cast %20 : vector<1x56x128xf32> to vector<56x128xf32>
    %22 = vector.broadcast %16 : vector<1x128xf32> to vector<56x128xf32>
    %23 = arith.mulf %21, %22 : vector<56x128xf32>
    %24 = vector.broadcast %19 : vector<1x128xf32> to vector<56x128xf32>
    %25 = arith.addf %23, %24 : vector<56x128xf32>
    %cst_12 = arith.constant 0.000000e+00 : f32
    %26 = vector.broadcast %cst_12 : f32 to vector<56x128xf32>
    %27 = arith.cmpf oge, %25, %26 : vector<56x128xf32>
    %cst_13 = arith.constant 2.000000e-01 : f32
    %28 = vector.broadcast %cst_13 : f32 to vector<56x128xf32>
    %29 = arith.mulf %28, %25 : vector<56x128xf32>
    %30 = arith.select %27, %25, %29 : vector<56x128xi1>, vector<56x128xf32>
    %c0_14 = arith.constant 0 : index
    %c0_15 = arith.constant 0 : index
    %c0_16 = arith.constant 0 : index
    %31 = vector.load %arg6[%c0_14, %c0_15, %c0_16] : memref<1x56x128xf32, #tpu.memory_space<vmem>>, vector<1x56x128xf32>
    %32 = vector.shape_cast %31 : vector<1x56x128xf32> to vector<56x128xf32>
    %33 = vector.shape_cast %30 : vector<56x128xf32> to vector<1x56x128xf32>
    tpu.vector_store %arg6[%c0_14, %c0_15, %c0_16], %33 {strides = array<i32>} : memref<1x56x128xf32, #tpu.memory_space<vmem>>, vector<1x56x128xf32>,
    return
  }
  func.func @transform_0(%arg0: i32, %arg1: i32) -> (i32, i32, i32) {
    %c0_i32 = arith.constant 0 : i32
    %c0_i32_0 = arith.constant 0 : i32
    return %arg0, %arg1, %c0_i32 : i32, i32, i32
  }
  func.func @transform_1(%arg0: i32, %arg1: i32) -> (i32, i32, i32) {
    %c0_i32 = arith.constant 0 : i32
    %c0_i32_0 = arith.constant 0 : i32
    %c0_i32_1 = arith.constant 0 : i32
    return %arg0, %c0_i32, %c0_i32_0 : i32, i32, i32
  }
  func.func @transform_2(%arg0: i32, %arg1: i32) -> (i32, i32) {
    %c0_i32 = arith.constant 0 : i32
    %c0_i32_0 = arith.constant 0 : i32
    %c0_i32_1 = arith.constant 0 : i32
    return %c0_i32, %c0_i32_0 : i32, i32
  }
  func.func @transform_3(%arg0: i32, %arg1: i32) -> (i32, i32) {
    %c0_i32 = arith.constant 0 : i32
    %c0_i32_0 = arith.constant 0 : i32
    %c0_i32_1 = arith.constant 0 : i32
    return %c0_i32, %c0_i32_0 : i32, i32
  }
  func.func @transform_4(%arg0: i32, %arg1: i32) -> (i32, i32, i32) {
    %c0_i32 = arith.constant 0 : i32
    %c0_i32_0 = arith.constant 0 : i32
    return %arg0, %arg1, %c0_i32 : i32, i32, i32
  }
}

module attributes {stable_mosaic.version = 11 : i64} {
  func.func @_conv_stats_kernel(%arg0: i32, %arg1: i32, %arg2: memref<1x56x128xf32, #tpu.memory_space<vmem>>, %arg3: memref<128x128xf32, #tpu.memory_space<vmem>>, %arg4: memref<1x56x128xf32, #tpu.memory_space<vmem>>, %arg5: memref<1x2x128xf32, #tpu.memory_space<vmem>>) attributes {dimension_semantics = [#tpu.dimension_semantics<parallel>, #tpu.dimension_semantics<arbitrary>], iteration_bounds = array<i64: 2, 1>, scalar_prefetch = 0 : i64, scratch_operands = 0 : i64, tpu.core_type = #tpu.core_type<tc>, window_params = [{transform_indices = @transform_0, window_bounds = array<i64: 1, 56, 128>}, {pipeline_mode = #tpu.pipeline_mode<synchronous>, transform_indices = @transform_1, window_bounds = array<i64: 128, 128>}, {transform_indices = @transform_2, window_bounds = array<i64: 1, 56, 128>}, {transform_indices = @transform_3, window_bounds = array<i64: 1, 2, 128>}]} {
    %c0 = arith.constant 0 : index
    %c0_0 = arith.constant 0 : index
    %c0_1 = arith.constant 0 : index
    %0 = vector.load %arg2[%c0, %c0_0, %c0_1] : memref<1x56x128xf32, #tpu.memory_space<vmem>>, vector<1x56x128xf32>
    %1 = vector.shape_cast %0 : vector<1x56x128xf32> to vector<56x128xf32>
    %c0_2 = arith.constant 0 : index
    %c0_3 = arith.constant 0 : index
    %2 = vector.load %arg3[%c0_2, %c0_3] : memref<128x128xf32, #tpu.memory_space<vmem>>, vector<128x128xf32>
    %cst = arith.constant dense<0.000000e+00> : vector<56x128xf32>
    %3 = tpu.matmul %1, %2, %cst {dimension_numbers = #tpu.dot_dimension_numbers<[1], [0], [0], [1], [0, 0, 1, 1], [], []>} : vector<56x128xf32>, vector<128x128xf32>, vector<56x128xf32> -> vector<56x128xf32>
    %c0_4 = arith.constant 0 : index
    %c0_5 = arith.constant 0 : index
    %c0_6 = arith.constant 0 : index
    %4 = vector.load %arg4[%c0_4, %c0_5, %c0_6] : memref<1x56x128xf32, #tpu.memory_space<vmem>>, vector<1x56x128xf32>
    %5 = vector.shape_cast %4 : vector<1x56x128xf32> to vector<56x128xf32>
    %6 = vector.shape_cast %3 : vector<56x128xf32> to vector<1x56x128xf32>
    tpu.vector_store %arg4[%c0_4, %c0_5, %c0_6], %6 {strides = array<i32>} : memref<1x56x128xf32, #tpu.memory_space<vmem>>, vector<1x56x128xf32>,
    %cst_7 = arith.constant dense<0.000000e+00> : vector<128xf32>
    %7 = vector.multi_reduction <add>, %3, %cst_7 [0] : vector<56x128xf32> to vector<128xf32>
    %8 = vector.shape_cast %7 : vector<128xf32> to vector<1x128xf32>
    %9 = arith.mulf %3, %3 : vector<56x128xf32>
    %cst_8 = arith.constant dense<0.000000e+00> : vector<128xf32>
    %10 = vector.multi_reduction <add>, %9, %cst_8 [0] : vector<56x128xf32> to vector<128xf32>
    %11 = vector.shape_cast %10 : vector<128xf32> to vector<1x128xf32>
    %12 = tpu.concatenate %8, %11 in 0 : vector<1x128xf32>, vector<1x128xf32> -> vector<2x128xf32>
    %c0_i32 = arith.constant 0 : i32
    %13 = arith.cmpi eq, %arg1, %c0_i32 : i32
    %14 = arith.extui %13 : i1 to i32
    %c0_i32_9 = arith.constant 0 : i32
    %15 = arith.cmpi ne, %14, %c0_i32_9 : i32
    scf.if %15 {
      %cst_16 = arith.constant 0.000000e+00 : f32
      %22 = vector.broadcast %cst_16 : f32 to vector<2x128xf32>
      %c0_17 = arith.constant 0 : index
      %c0_18 = arith.constant 0 : index
      %c0_19 = arith.constant 0 : index
      %23 = vector.load %arg5[%c0_17, %c0_18, %c0_19] : memref<1x2x128xf32, #tpu.memory_space<vmem>>, vector<1x2x128xf32>
      %24 = vector.shape_cast %23 : vector<1x2x128xf32> to vector<2x128xf32>
      %25 = vector.shape_cast %22 : vector<2x128xf32> to vector<1x2x128xf32>
      tpu.vector_store %arg5[%c0_17, %c0_18, %c0_19], %25 {strides = array<i32>} : memref<1x2x128xf32, #tpu.memory_space<vmem>>, vector<1x2x128xf32>,
    } else {
    }
    %c0_10 = arith.constant 0 : index
    %c0_11 = arith.constant 0 : index
    %c0_12 = arith.constant 0 : index
    %16 = vector.load %arg5[%c0_10, %c0_11, %c0_12] : memref<1x2x128xf32, #tpu.memory_space<vmem>>, vector<1x2x128xf32>
    %17 = vector.shape_cast %16 : vector<1x2x128xf32> to vector<2x128xf32>
    %18 = arith.addf %17, %12 : vector<2x128xf32>
    %c0_13 = arith.constant 0 : index
    %c0_14 = arith.constant 0 : index
    %c0_15 = arith.constant 0 : index
    %19 = vector.load %arg5[%c0_13, %c0_14, %c0_15] : memref<1x2x128xf32, #tpu.memory_space<vmem>>, vector<1x2x128xf32>
    %20 = vector.shape_cast %19 : vector<1x2x128xf32> to vector<2x128xf32>
    %21 = vector.shape_cast %18 : vector<2x128xf32> to vector<1x2x128xf32>
    tpu.vector_store %arg5[%c0_13, %c0_14, %c0_15], %21 {strides = array<i32>} : memref<1x2x128xf32, #tpu.memory_space<vmem>>, vector<1x2x128xf32>,
    return
  }
  func.func @transform_0(%arg0: i32, %arg1: i32) -> (i32, i32, i32) {
    %c0_i32 = arith.constant 0 : i32
    %c0_i32_0 = arith.constant 0 : i32
    return %arg0, %arg1, %c0_i32 : i32, i32, i32
  }
  func.func @transform_1(%arg0: i32, %arg1: i32) -> (i32, i32) {
    %c0_i32 = arith.constant 0 : i32
    %c0_i32_0 = arith.constant 0 : i32
    %c0_i32_1 = arith.constant 0 : i32
    return %c0_i32, %c0_i32_0 : i32, i32
  }
  func.func @transform_2(%arg0: i32, %arg1: i32) -> (i32, i32, i32) {
    %c0_i32 = arith.constant 0 : i32
    %c0_i32_0 = arith.constant 0 : i32
    return %arg0, %arg1, %c0_i32 : i32, i32, i32
  }
  func.func @transform_3(%arg0: i32, %arg1: i32) -> (i32, i32, i32) {
    %c0_i32 = arith.constant 0 : i32
    %c0_i32_0 = arith.constant 0 : i32
    %c0_i32_1 = arith.constant 0 : i32
    return %arg0, %c0_i32, %c0_i32_0 : i32, i32, i32
  }
}

</mosaic_0001>

<llo_original>
// kernel: cnn_block.2
$region0: #{cnn_block.2}
  #allocation0 [shape = 'u32[]', space=smem, size = 0x4, offset = 0x4, fixed_abs, tag = 'smem constant byte address 0x4 - core index']
  #allocation1 [shape = 'u32[144,128]{1,0:T(1,128)}', space=vmem, size = 0x12000, scoped, tag = 'internal scratch']
  %s0 = inlined_call_operand.vmem [shape: f32[2,56,128], index: 0, kind: input, shape index: {}]
  %s1 = inlined_call_operand.vmem [shape: f32[128,128], index: 1, kind: input, shape index: {}]
  %s2 = inlined_call_operand.vmem [shape: f32[2,56,128], index: 2, kind: output, shape index: {0}]
  %s3 = inlined_call_operand.vmem [shape: f32[2,2,128], index: 3, kind: output, shape index: {1}]
  %4 = xla_tuple %s2, %s3
  %s5 = sld [smem:[#allocation0]]
  $region53: #{cnn_block.2} parent=0
    _
  %s7 = ssub.s32 1, %s5
  %s8 = scalar_select 0, %s7, %s5
  loop: start=0, step=1, limit=4
  $region2: #{cnn_block.2} parent=0 // loop_pre_header
    _
  $region3: #{cnn_block.2} parent=0 // loop_header
    %s10 = sphi 0, %s14
    %p11 = scmp.ge.s32.totalorder %s10, 4
    %s17 = sphi 0, %s29
    %s18 = sphi 0, %s25
    %s19 = sphi 0, %s17
    %s20 = sphi 0, %s18
    %s21 = sphi 0, %s19
    %s22 = sphi 0, %s20
    %s34 = sphi 0, %s36
    %s37 = sphi 0, %s34
    %s38 = sphi 0, %s37
    %s54 = sphi 0, %s38
    %s58 = sphi 0, %s58
    %s60 = sphi 0, %s58
    %s61 = sphi 0, %s60
    %s75 = sphi 0, %s61
    %s83 = sphi 0, %s85
    %s86 = sphi 0, %s83
    %s87 = sphi 0, %s86
    %s103 = sphi 0, %s87
    %s109 = sphi 0, %s111
    %s112 = sphi 0, %s109
    %s113 = sphi 0, %s112
    %s129 = sphi 0, %s113
  $region4: #{cnn_block.2} parent=0 // loop_header_branch
    %13 = sbr.rel (%p11) target = $region8
  $region5: #{cnn_block.2} parent=0 // loop_body
    %s15 = ssub.s32 %s10, 1
    %s16 = ssub.s32 %s10, 2
    %s23 = sadd.s32 1, %s18
    %p24 = scmp.ge.s32.totalorder %s23, 1
    %s25 = scalar_select %p24, 0, %s23
    %s26 = sadd.s32 1, %s17
    %s27 = scalar_select %p24, %s26, %s17
    %p28 = scmp.ge.s32.totalorder %s27, 2
    %s29 = scalar_select %p28, 0, %s27
    %s30 = ssub.s32 %s17, %s29
    %s31 = ssub.s32 %s18, %s25
    %s32 = sor.u32 %s30, %s31
    %p33 = scmp.eq.s32.totalorder %s32, 0
    %s35 = sadd.s32 %s34, 1
    %s36 = scalar_select %p33, %s34, %s35
    %p39 = pneg %p33
    %p40 = scmp.eq.s32.totalorder %s10, 1
    %p41 = por %p39, %p40
    %p42 = scmp.ne.s32.totalorder %s34, %s37
    %p43 = scmp.eq.s32.totalorder %s10, 0
    %p44 = por %p42, %p43
    %p45 = scmp.ne.s32.totalorder %s34, %s37
    %p46 = scmp.eq.s32.totalorder %s15, 1
    %p47 = por %p45, %p46
    %p48 = scmp.ne.s32.totalorder %s37, %s38
    %p49 = scmp.eq.s32.totalorder %s15, 0
    %p50 = por %p48, %p49
    %p51 = scmp.ne.s32.totalorder %s37, %s38
    %p52 = scmp.eq.s32.totalorder %s16, 1
    %p53 = por %p51, %p52
    %p55 = scmp.ne.s32.totalorder %s38, %s54
    %p56 = scmp.eq.s32.totalorder %s16, 0
    %p57 = por %p55, %p56
    %s59 = sadd.s32 %s58, 1
    %p62 = scmp.eq.s32.totalorder %s10, 1
    %p63 = scmp.ne.s32.totalorder %s58, %s60
    %p64 = scmp.eq.s32.totalorder %s10, 0
    %p65 = por %p63, %p64
    %p66 = scmp.ne.s32.totalorder %s58, %s60
    %p67 = scmp.eq.s32.totalorder %s15, 1
    %p68 = por %p66, %p67
    %p69 = scmp.ne.s32.totalorder %s60, %s61
    %p70 = scmp.eq.s32.totalorder %s15, 0
    %p71 = por %p69, %p70
    %p72 = scmp.ne.s32.totalorder %s60, %s61
    %p73 = scmp.eq.s32.totalorder %s16, 1
    %p74 = por %p72, %p73
    %p76 = scmp.ne.s32.totalorder %s61, %s75
    %p77 = scmp.eq.s32.totalorder %s16, 0
    %p78 = por %p76, %p77
    %s79 = ssub.s32 %s17, %s29
    %s80 = ssub.s32 %s18, %s25
    %s81 = sor.u32 %s79, %s80
    %p82 = scmp.eq.s32.totalorder %s81, 0
    %s84 = sadd.s32 %s83, 1
    %s85 = scalar_select %p82, %s83, %s84
    %p88 = pneg %p82
    %p89 = scmp.eq.s32.totalorder %s10, 1
    %p90 = por %p88, %p89
    %p91 = scmp.ne.s32.totalorder %s83, %s86
    %p92 = scmp.eq.s32.totalorder %s10, 0
    %p93 = por %p91, %p92
    %p94 = scmp.ne.s32.totalorder %s83, %s86
    %p95 = scmp.eq.s32.totalorder %s15, 1
    %p96 = por %p94, %p95
    %p97 = scmp.ne.s32.totalorder %s86, %s87
    %p98 = scmp.eq.s32.totalorder %s15, 0
    %p99 = por %p97, %p98
    %p100 = scmp.ne.s32.totalorder %s86, %s87
    %p101 = scmp.eq.s32.totalorder %s16, 1
    %p102 = por %p100, %p101
    %p104 = scmp.ne.s32.totalorder %s87, %s103
    %p105 = scmp.eq.s32.totalorder %s16, 0
    %p106 = por %p104, %p105
    %s107 = ssub.s32 %s17, %s29
    %p108 = scmp.eq.s32.totalorder %s107, 0
    %s110 = sadd.s32 %s109, 1
    %s111 = scalar_select %p108, %s109, %s110
    %p114 = pneg %p108
    %p115 = scmp.eq.s32.totalorder %s10, 1
    %p116 = por %p114, %p115
    %p117 = scmp.ne.s32.totalorder %s109, %s112
    %p118 = scmp.eq.s32.totalorder %s10, 0
    %p119 = por %p117, %p118
    %p120 = scmp.ne.s32.totalorder %s109, %s112
    %p121 = scmp.eq.s32.totalorder %s15, 1
    %p122 = por %p120, %p121
    %p123 = scmp.ne.s32.totalorder %s112, %s113
    %p124 = scmp.eq.s32.totalorder %s15, 0
    %p125 = por %p123, %p124
    %p126 = scmp.ne.s32.totalorder %s112, %s113
    %p127 = scmp.eq.s32.totalorder %s16, 1
    %p128 = por %p126, %p127
    %p130 = scmp.ne.s32.totalorder %s113, %s129
    %p131 = scmp.eq.s32.totalorder %s16, 0
    %p132 = por %p130, %p131
    %p133 = scmp.le.s32.totalorder 1, %s10
    %p134 = scmp.lt.s32.totalorder %s10, 3
    %p135 = pnand %p133, %p134
    %p136 = pneg %p135
    // Predicated region
    $region9: #{cnn_block.2} parent=5 // pred_check
      _
    $region10: #{cnn_block.2} parent=5 // pred_check_branch
      %138 = sbr.rel (%p135) target = $region12
    $region11: #{cnn_block.2} parent=5 // pred_region
      %s139 = ssub.s32 %s10, 1
      // Predicated region
      $region13: #{cnn_block.2} parent=11 // pred_check
        %p140 = pneg %p71
      $region14: #{cnn_block.2} parent=11 // pred_check_branch
        %142 = sbr.rel (%p140) target = $region16
      $region15: #{cnn_block.2} parent=11 // pred_region
        _
      $region16: #{cnn_block.2} parent=11 // pred_fallthru
        _
    $region12: #{cnn_block.2} parent=5 // pred_fallthru
      _
    %p143 = scmp.lt.s32.totalorder %s10, 2
    // Predicated region
    $region17: #{cnn_block.2} parent=5 // pred_check
      %p144 = pneg %p143
    $region18: #{cnn_block.2} parent=5 // pred_check_branch
      %146 = sbr.rel (%p144) target = $region20
    $region19: #{cnn_block.2} parent=5 // pred_region
      // Predicated region
      $region21: #{cnn_block.2} parent=19 // pred_check
        %p147 = pneg %p44
      $region22: #{cnn_block.2} parent=19 // pred_check_branch
        %149 = sbr.rel (%p147) target = $region24
      $region23: #{cnn_block.2} parent=19 // pred_region
        %s150 = smul.u32 7, %s18
        %p151 = scmp.lt.s32.totalorder %s17, 1
        %s152 = scalar_select %p151, %s17, 1
        %p153 = scmp.lt.s32.totalorder %s150, 6
        %s154 = scalar_select %p153, %s150, 6
        %s155 = smul.addr %s152, 7
        %s156 = sadd.s32 %s154, %s155
        %s157 = smul.addr %s156, 8
        %s158 = scalar_lea.vmem %s0, %s157
        %s159 = smul.u32 7, %s18
      $region24: #{cnn_block.2} parent=19 // pred_fallthru
        _
    $region20: #{cnn_block.2} parent=5 // pred_fallthru
      _
    %p160 = scmp.le.s32.totalorder 1, %s10
    %p161 = scmp.lt.s32.totalorder %s10, 3
    %p162 = pnand %p160, %p161
    %p163 = pneg %p162
    // Predicated region
    $region25: #{cnn_block.2} parent=5 // pred_check
      _
    $region26: #{cnn_block.2} parent=5 // pred_check_branch
      %165 = sbr.rel (%p162) target = $region28
    $region27: #{cnn_block.2} parent=5 // pred_region
      %s166 = ssub.s32 %s10, 1
      %s167 = smul.u32 7, %s20
      %p168 = scmp.lt.s32.totalorder %s19, 1
      %s169 = scalar_select %p168, %s19, 1
      %p170 = scmp.lt.s32.totalorder %s167, 6
      %s171 = scalar_select %p170, %s167, 6
      %s172 = smul.addr %s169, 7
      %s173 = sadd.s32 %s171, %s172
      %s174 = smul.addr %s173, 8
      %s175 = scalar_lea.vmem %s0, %s174
      %p176 = pneg %p50
      %p177 = pneg %p47
      %p178 = pneg %p71
      %p179 = pneg %p68
      %p180 = pneg %p99
      %p181 = pneg %p96
      %s182 = smul.u32 7, %s20
      %p183 = scmp.lt.s32.totalorder %s19, 1
      %s184 = scalar_select %p183, %s19, 1
      %p185 = scmp.lt.s32.totalorder %s182, 6
      %s186 = scalar_select %p185, %s182, 6
      %s187 = smul.addr %s184, 7
      %s188 = sadd.s32 %s186, %s187
      %s189 = smul.addr %s188, 8
      %s190 = scalar_lea.vmem %s2, %s189
      %p191 = pneg %p125
      %p192 = pneg %p122
      %p193 = scmp.lt.s32.totalorder %s19, 1
      %s194 = scalar_select %p193, %s19, 1
      %s195 = smul.addr %s194, 2
      %s196 = scalar_lea.vmem %s3, %s195
      %s197 = smul.u32 7, %s20
      %p198 = scmp.lt.s32.totalorder %s19, 1
      %s199 = scalar_select %p198, %s19, 1
      %p200 = scmp.lt.s32.totalorder %s197, 6
      %s201 = scalar_select %p200, %s197, 6
      %s202 = smul.addr %s199, 7
      %s203 = sadd.s32 %s201, %s202
      %s204 = smul.addr %s203, 8
      %s205 = scalar_lea.vmem %s0, %s204
      %s206 = smul.u32 7, %s20
      %s207 = smul.u32 7, %s20
      %p208 = scmp.lt.s32.totalorder %s19, 1
      %s209 = scalar_select %p208, %s19, 1
      %p210 = scmp.lt.s32.totalorder %s207, 6
      %s211 = scalar_select %p210, %s207, 6
      %s212 = smul.addr %s209, 7
      %s213 = sadd.s32 %s211, %s212
      %s214 = smul.addr %s213, 8
      %s215 = scalar_lea.vmem %s2, %s214
      %s216 = smul.u32 7, %s20
      %p217 = scmp.lt.s32.totalorder %s19, 1
      %s218 = scalar_select %p217, %s19, 1
      %s219 = smul.addr %s218, 2
      %s220 = scalar_lea.vmem %s3, %s219
      %v221 = vld [vmem:[%s205] sm:$0xff]
      %v222 = vld [vmem:[%s205 + $0x8] sm:$0xff]
      %v223 = vld [vmem:[%s205 + $0x10] sm:$0xff]
      %v224 = vld [vmem:[%s205 + $0x18] sm:$0xff]
      %v225 = vld [vmem:[%s205 + $0x20] sm:$0xff]
      %v226 = vld [vmem:[%s205 + $0x28] sm:$0xff]
      %v227 = vld [vmem:[%s205 + $0x30] sm:$0xff]
      %v228 = vld [vmem:[%s1] sm:$0xff]
      %v229 = vld [vmem:[%s1 + $0x8] sm:$0xff]
      %v230 = vld [vmem:[%s1 + $0x10] sm:$0xff]
      %v231 = vld [vmem:[%s1 + $0x18] sm:$0xff]
      %v232 = vld [vmem:[%s1 + $0x20] sm:$0xff]
      %v233 = vld [vmem:[%s1 + $0x28] sm:$0xff]
      %v234 = vld [vmem:[%s1 + $0x30] sm:$0xff]
      %v235 = vld [vmem:[%s1 + $0x38] sm:$0xff]
      %v236 = vld [vmem:[%s1 + $0x40] sm:$0xff]
      %v237 = vld [vmem:[%s1 + $0x48] sm:$0xff]
      %v238 = vld [vmem:[%s1 + $0x50] sm:$0xff]
      %v239 = vld [vmem:[%s1 + $0x58] sm:$0xff]
      %v240 = vld [vmem:[%s1 + $0x60] sm:$0xff]
      %v241 = vld [vmem:[%s1 + $0x68] sm:$0xff]
      %v242 = vld [vmem:[%s1 + $0x70] sm:$0xff]
      %v243 = vld [vmem:[%s1 + $0x78] sm:$0xff]
      %244 = vmatprep.subr.mxu0 0.0
      %245 = vmatpush1.msra.mxu0 %v228
      %246 = vmatprep.subr.mxu0 0.0
      %247 = vmatpush1.msra.mxu0 %v229
      %248 = vmatprep.subr.mxu0 0.0
      %249 = vmatpush1.msra.mxu0 %v230
      %250 = vmatprep.subr.mxu0 0.0
      %251 = vmatpush1.msra.mxu0 %v231
      %252 = vmatprep.subr.mxu0 0.0
      %253 = vmatpush1.msra.mxu0 %v232
      %254 = vmatprep.subr.mxu0 0.0
      %255 = vmatpush1.msra.mxu0 %v233
      %256 = vmatprep.subr.mxu0 0.0
      %257 = vmatpush1.msra.mxu0 %v234
      %258 = vmatprep.subr.mxu0 0.0
      %259 = vmatpush1.msra.mxu0 %v235
      %260 = vmatprep.subr.mxu0 0.0
      %261 = vmatpush1.msra.mxu0 %v236
      %262 = vmatprep.subr.mxu0 0.0
      %263 = vmatpush1.msra.mxu0 %v237
      %264 = vmatprep.subr.mxu0 0.0
      %265 = vmatpush1.msra.mxu0 %v238
      %266 = vmatprep.subr.mxu0 0.0
      %267 = vmatpush1.msra.mxu0 %v239
      %268 = vmatprep.subr.mxu0 0.0
      %269 = vmatpush1.msra.mxu0 %v240
      %270 = vmatprep.subr.mxu0 0.0
      %271 = vmatpush1.msra.mxu0 %v241
      %272 = vmatprep.subr.mxu0 0.0
      %273 = vmatpush1.msra.mxu0 %v242
      %274 = vmatprep.subr.mxu0 0.0
      %275 = vmatpush1.msra.mxu0 %v243
      %276 = vmatprep.subr.mxu0 0.0
      %277 = vmatpush1.msra.mxu0 0.0
      %278 = vmatprep.subr.mxu0 0.0
      %279 = vmatpush1.msra.mxu0 0.0
      %280 = vmatprep.subr.mxu0 0.0
      %281 = vmatpush1.msra.mxu0 0.0
      %282 = vmatprep.subr.mxu0 0.0
      %283 = vmatpush1.msra.mxu0 0.0
      %284 = vmatprep.subr.mxu0 0.0
      %285 = vmatpush1.msra.mxu0 0.0
      %286 = vmatprep.subr.mxu0 0.0
      %287 = vmatpush1.msra.mxu0 0.0
      %288 = vmatprep.subr.mxu0 0.0
      %289 = vmatpush1.msra.mxu0 0.0
      %290 = vmatprep.subr.mxu0 0.0
      %291 = vmatpush1.msra.mxu0 0.0
      %292 = vmatprep.subr.mxu0 0.0
      %293 = vmatpush1.msra.mxu0 0.0
      %294 = vmatprep.subr.mxu0 0.0
      %295 = vmatpush1.msra.mxu0 0.0
      %296 = vmatprep.subr.mxu0 0.0
      %297 = vmatpush1.msra.mxu0 0.0
      %298 = vmatprep.subr.mxu0 0.0
      %299 = vmatpush1.msra.mxu0 0.0
      %300 = vmatprep.subr.mxu0 0.0
      %301 = vmatpush1.msra.mxu0 0.0
      %302 = vmatprep.subr.mxu0 0.0
      %303 = vmatpush1.msra.mxu0 0.0
      %304 = vmatprep.subr.mxu0 0.0
      %305 = vmatpush1.msra.mxu0 0.0
      %306 = vmatprep.subr.mxu0 0.0
      %307 = vmatpush1.msra.mxu0 0.0
      %308 = vmatprep.mubr.f32.mxu0 0.0
      %309 = vmatmul.mubr.f32.gmra.mrb[0].mxu0 %v221
      %v310 = vpop.f32.mrb[0].mxu0
      %v311 = vadd.f32 0.0, %v310
      %v312 = vpop.f32.mrb[0].mxu0
      %313 = vmatprep.mubr.f32.mxu0 0.0
      %314 = vmatmul.mubr.f32.gmra.mrb[0].mxu0 %v222
      %v315 = vpop.f32.mrb[0].mxu0
      %v316 = vadd.f32 0.0, %v315
      %v317 = vpop.f32.mrb[0].mxu0
      %318 = vmatprep.mubr.f32.mxu0 0.0
      %319 = vmatmul.mubr.f32.gmra.mrb[0].mxu0 %v223
      %v320 = vpop.f32.mrb[0].mxu0
      %v321 = vadd.f32 0.0, %v320
      %v322 = vpop.f32.mrb[0].mxu0
      %323 = vmatprep.mubr.f32.mxu0 0.0
      %324 = vmatmul.mubr.f32.gmra.mrb[0].mxu0 %v224
      %v325 = vpop.f32.mrb[0].mxu0
      %v326 = vadd.f32 0.0, %v325
      %v327 = vpop.f32.mrb[0].mxu0
      %328 = vmatprep.mubr.f32.mxu0 0.0
      %329 = vmatmul.mubr.f32.gmra.mrb[0].mxu0 %v225
      %v330 = vpop.f32.mrb[0].mxu0
      %v331 = vadd.f32 0.0, %v330
      %v332 = vpop.f32.mrb[0].mxu0
      %333 = vmatprep.mubr.f32.mxu0 0.0
      %334 = vmatmul.mubr.f32.gmra.mrb[0].mxu0 %v226
      %v335 = vpop.f32.mrb[0].mxu0
      %v336 = vadd.f32 0.0, %v335
      %v337 = vpop.f32.mrb[0].mxu0
      %338 = vmatprep.mubr.f32.mxu0 0.0
      %339 = vmatmul.mubr.f32.gmra.mrb[0].mxu0 %v227
      %v340 = vpop.f32.mrb[0].mxu0
      %v341 = vadd.f32 0.0, %v340
      %v342 = vpop.f32.mrb[0].mxu0
      %343 = vdwg.mxu0
      %344 = vst [vmem:[%s215] sm:$0xff] %v311
      %345 = vst [vmem:[%s215 + $0x8] sm:$0xff] %v316
      %346 = vst [vmem:[%s215 + $0x10] sm:$0xff] %v321
      %347 = vst [vmem:[%s215 + $0x18] sm:$0xff] %v326
      %348 = vst [vmem:[%s215 + $0x20] sm:$0xff] %v331
      %349 = vst [vmem:[%s215 + $0x28] sm:$0xff] %v336
      %350 = vst [vmem:[%s215 + $0x30] sm:$0xff] %v341
      %v351 = vadd.f32 %v311, %v316
      %v352 = vadd.f32 %v351, %v321
      %v353 = vadd.f32 %v352, %v326
      %v354 = vadd.f32 %v353, %v331
      %v355 = vadd.f32 %v354, %v336
      %v356 = vadd.f32 %v355, %v341
      %v357 = vrot.slane %v356, 4
      %v358 = vadd.f32 %v356, %v357
      %v359 = vrot.slane %v358, 2
      %v360 = vadd.f32 %v358, %v359
      %v361 = vrot.slane %v360, 1
      %v362 = vadd.f32 %v360, %v361
      %v363 = vmul.f32 %v311, %v311
      %v364 = vmul.f32 %v316, %v316
      %v365 = vmul.f32 %v321, %v321
      %v366 = vmul.f32 %v326, %v326
      %v367 = vmul.f32 %v331, %v331
      %v368 = vmul.f32 %v336, %v336
      %v369 = vmul.f32 %v341, %v341
      %v370 = vadd.f32 %v363, %v364
      %v371 = vadd.f32 %v370, %v365
      %v372 = vadd.f32 %v371, %v366
      %v373 = vadd.f32 %v372, %v367
      %v374 = vadd.f32 %v373, %v368
      %v375 = vadd.f32 %v374, %v369
      %v376 = vrot.slane %v375, 4
      %v377 = vadd.f32 %v375, %v376
      %v378 = vrot.slane %v377, 2
      %v379 = vadd.f32 %v377, %v378
      %v380 = vrot.slane %v379, 1
      %v381 = vadd.f32 %v379, %v380
      %vm382 = vcmask 1040384
      %v383 = vsel %vm382, %v362, %v381
      %p384 = scmp.eq.s32.totalorder %s20, 0
      // Predicated region
      $region29: #{cnn_block.2} parent=27 // pred_check
        %p385 = pneg %p384
      $region30: #{cnn_block.2} parent=27 // pred_check_branch
        %387 = sbr.rel (%p385) target = $region32
      $region31: #{cnn_block.2} parent=27 // pred_region
        %388 = vst [vmem:[%s220] sm:$0x3] 0.0
      $region32: #{cnn_block.2} parent=27 // pred_fallthru
        _
      %v389 = vld [vmem:[%s220] sm:$0x3]
      %v390 = vadd.f32 %v389, %v383
      %391 = vst [vmem:[%s220] sm:$0x3] %v390
      %s392 = smul.u32 7, %s20
      %p393 = scmp.lt.s32.totalorder %s19, 1
      %s394 = scalar_select %p393, %s19, 1
      %p395 = scmp.lt.s32.totalorder %s392, 6
      %s396 = scalar_select %p395, %s392, 6
      %s397 = smul.addr %s394, 7
      %s398 = sadd.s32 %s396, %s397
      %s399 = smul.addr %s398, 8
      %s400 = scalar_lea.vmem %s2, %s399
      %p401 = scmp.lt.s32.totalorder %s19, 1
      %s402 = scalar_select %p401, %s19, 1
      %s403 = smul.addr %s402, 2
      %s404 = scalar_lea.vmem %s3, %s403
      // Predicated region
      $region33: #{cnn_block.2} parent=27 // pred_check
        %p405 = pneg %p96
      $region34: #{cnn_block.2} parent=27 // pred_check_branch
        %407 = sbr.rel (%p405) target = $region36
      $region35: #{cnn_block.2} parent=27 // pred_region
        %s408 = smul.u32 7, %s20
      $region36: #{cnn_block.2} parent=27 // pred_fallthru
        _
      // Predicated region
      $region37: #{cnn_block.2} parent=27 // pred_check
        %p409 = pneg %p122
      $region38: #{cnn_block.2} parent=27 // pred_check_branch
        %411 = sbr.rel (%p409) target = $region40
      $region39: #{cnn_block.2} parent=27 // pred_region
        _
      $region40: #{cnn_block.2} parent=27 // pred_fallthru
        _
    $region28: #{cnn_block.2} parent=5 // pred_fallthru
      _
    %p412 = scmp.le.s32.totalorder 2, %s10
    // Predicated region
    $region41: #{cnn_block.2} parent=5 // pred_check
      %p413 = pneg %p412
    $region42: #{cnn_block.2} parent=5 // pred_check_branch
      %415 = sbr.rel (%p413) target = $region44
    $region43: #{cnn_block.2} parent=5 // pred_region
      %s416 = ssub.s32 %s10, 2
      // Predicated region
      $region45: #{cnn_block.2} parent=43 // pred_check
        %p417 = pneg %p102
      $region46: #{cnn_block.2} parent=43 // pred_check_branch
        %419 = sbr.rel (%p417) target = $region48
      $region47: #{cnn_block.2} parent=43 // pred_region
        %s420 = smul.u32 7, %s22
        %p421 = scmp.lt.s32.totalorder %s21, 1
        %s422 = scalar_select %p421, %s21, 1
        %p423 = scmp.lt.s32.totalorder %s420, 6
        %s424 = scalar_select %p423, %s420, 6
        %s425 = smul.addr %s422, 7
        %s426 = sadd.s32 %s424, %s425
        %s427 = smul.addr %s426, 8
        %s428 = scalar_lea.vmem %s2, %s427
      $region48: #{cnn_block.2} parent=43 // pred_fallthru
        _
      // Predicated region
      $region49: #{cnn_block.2} parent=43 // pred_check
        %p429 = pneg %p128
      $region50: #{cnn_block.2} parent=43 // pred_check_branch
        %431 = sbr.rel (%p429) target = $region52
      $region51: #{cnn_block.2} parent=43 // pred_region
        %p432 = scmp.lt.s32.totalorder %s21, 1
        %s433 = scalar_select %p432, %s21, 1
        %s434 = smul.addr %s433, 2
        %s435 = scalar_lea.vmem %s3, %s434
      $region52: #{cnn_block.2} parent=43 // pred_fallthru
        _
    $region44: #{cnn_block.2} parent=5 // pred_fallthru
      _
  $region6: #{cnn_block.2} parent=0 // loop_footer
    %s14 = sadd.s32 1, %s10
  $region7: #{cnn_block.2} parent=0 // loop_footer_branch
    %9 = sbr.rel target = $region3
  $region8: #{cnn_block.2} parent=0 // loop_exit
    _

// kernel: cnn_block.3
$region0: #{cnn_block.3}
  #allocation0 [shape = 'u32[]', space=smem, size = 0x4, offset = 0x4, fixed_abs, tag = 'smem constant byte address 0x4 - core index']
  #allocation1 [shape = 'u32[144,128]{1,0:T(1,128)}', space=vmem, size = 0x12000, scoped, tag = 'internal scratch']
  %s0 = inlined_call_operand.vmem [shape: f32[2,56,128], index: 0, kind: input, shape index: {}]
  %s1 = inlined_call_operand.vmem [shape: f32[2,2,128], index: 1, kind: input, shape index: {}]
  %s2 = inlined_call_operand.vmem [shape: f32[1,128], index: 2, kind: input, shape index: {}]
  %s3 = inlined_call_operand.vmem [shape: f32[1,128], index: 3, kind: input, shape index: {}]
  %s4 = inlined_call_operand.vmem [shape: f32[2,56,128], index: 4, kind: output, shape index: {}]
  %s5 = sld [smem:[#allocation0]]
  $region49: #{cnn_block.3} parent=0
    _
  %s7 = ssub.s32 1, %s5
  %s8 = scalar_select 0, %s7, %s5
  loop: start=0, step=1, limit=4
  $region2: #{cnn_block.3} parent=0 // loop_pre_header
    _
  $region3: #{cnn_block.3} parent=0 // loop_header
    %s10 = sphi 0, %s14
    %p11 = scmp.ge.s32.totalorder %s10, 4
    %s17 = sphi 0, %s29
    %s18 = sphi 0, %s25
    %s19 = sphi 0, %s17
    %s20 = sphi 0, %s18
    %s21 = sphi 0, %s19
    %s22 = sphi 0, %s20
    %s34 = sphi 0, %s36
    %s37 = sphi 0, %s34
    %s38 = sphi 0, %s37
    %s54 = sphi 0, %s38
    %s60 = sphi 0, %s62
    %s63 = sphi 0, %s60
    %s64 = sphi 0, %s63
    %s80 = sphi 0, %s64
    %s84 = sphi 0, %s84
    %s86 = sphi 0, %s84
    %s87 = sphi 0, %s86
    %s101 = sphi 0, %s87
    %s105 = sphi 0, %s105
    %s107 = sphi 0, %s105
    %s108 = sphi 0, %s107
    %s122 = sphi 0, %s108
    %s130 = sphi 0, %s132
    %s133 = sphi 0, %s130
    %s134 = sphi 0, %s133
    %s150 = sphi 0, %s134
  $region4: #{cnn_block.3} parent=0 // loop_header_branch
    %13 = sbr.rel (%p11) target = $region8
  $region5: #{cnn_block.3} parent=0 // loop_body
    %s15 = ssub.s32 %s10, 1
    %s16 = ssub.s32 %s10, 2
    %s23 = sadd.s32 1, %s18
    %p24 = scmp.ge.s32.totalorder %s23, 1
    %s25 = scalar_select %p24, 0, %s23
    %s26 = sadd.s32 1, %s17
    %s27 = scalar_select %p24, %s26, %s17
    %p28 = scmp.ge.s32.totalorder %s27, 2
    %s29 = scalar_select %p28, 0, %s27
    %s30 = ssub.s32 %s17, %s29
    %s31 = ssub.s32 %s18, %s25
    %s32 = sor.u32 %s30, %s31
    %p33 = scmp.eq.s32.totalorder %s32, 0
    %s35 = sadd.s32 %s34, 1
    %s36 = scalar_select %p33, %s34, %s35
    %p39 = pneg %p33
    %p40 = scmp.eq.s32.totalorder %s10, 1
    %p41 = por %p39, %p40
    %p42 = scmp.ne.s32.totalorder %s34, %s37
    %p43 = scmp.eq.s32.totalorder %s10, 0
    %p44 = por %p42, %p43
    %p45 = scmp.ne.s32.totalorder %s34, %s37
    %p46 = scmp.eq.s32.totalorder %s15, 1
    %p47 = por %p45, %p46
    %p48 = scmp.ne.s32.totalorder %s37, %s38
    %p49 = scmp.eq.s32.totalorder %s15, 0
    %p50 = por %p48, %p49
    %p51 = scmp.ne.s32.totalorder %s37, %s38
    %p52 = scmp.eq.s32.totalorder %s16, 1
    %p53 = por %p51, %p52
    %p55 = scmp.ne.s32.totalorder %s38, %s54
    %p56 = scmp.eq.s32.totalorder %s16, 0
    %p57 = por %p55, %p56
    %s58 = ssub.s32 %s17, %s29
    %p59 = scmp.eq.s32.totalorder %s58, 0
    %s61 = sadd.s32 %s60, 1
    %s62 = scalar_select %p59, %s60, %s61
    %p65 = pneg %p59
    %p66 = scmp.eq.s32.totalorder %s10, 1
    %p67 = por %p65, %p66
    %p68 = scmp.ne.s32.totalorder %s60, %s63
    %p69 = scmp.eq.s32.totalorder %s10, 0
    %p70 = por %p68, %p69
    %p71 = scmp.ne.s32.totalorder %s60, %s63
    %p72 = scmp.eq.s32.totalorder %s15, 1
    %p73 = por %p71, %p72
    %p74 = scmp.ne.s32.totalorder %s63, %s64
    %p75 = scmp.eq.s32.totalorder %s15, 0
    %p76 = por %p74, %p75
    %p77 = scmp.ne.s32.totalorder %s63, %s64
    %p78 = scmp.eq.s32.totalorder %s16, 1
    %p79 = por %p77, %p78
    %p81 = scmp.ne.s32.totalorder %s64, %s80
    %p82 = scmp.eq.s32.totalorder %s16, 0
    %p83 = por %p81, %p82
    %s85 = sadd.s32 %s84, 1
    %p88 = scmp.eq.s32.totalorder %s10, 1
    %p89 = scmp.ne.s32.totalorder %s84, %s86
    %p90 = scmp.eq.s32.totalorder %s10, 0
    %p91 = por %p89, %p90
    %p92 = scmp.ne.s32.totalorder %s84, %s86
    %p93 = scmp.eq.s32.totalorder %s15, 1
    %p94 = por %p92, %p93
    %p95 = scmp.ne.s32.totalorder %s86, %s87
    %p96 = scmp.eq.s32.totalorder %s15, 0
    %p97 = por %p95, %p96
    %p98 = scmp.ne.s32.totalorder %s86, %s87
    %p99 = scmp.eq.s32.totalorder %s16, 1
    %p100 = por %p98, %p99
    %p102 = scmp.ne.s32.totalorder %s87, %s101
    %p103 = scmp.eq.s32.totalorder %s16, 0
    %p104 = por %p102, %p103
    %s106 = sadd.s32 %s105, 1
    %p109 = scmp.eq.s32.totalorder %s10, 1
    %p110 = scmp.ne.s32.totalorder %s105, %s107
    %p111 = scmp.eq.s32.totalorder %s10, 0
    %p112 = por %p110, %p111
    %p113 = scmp.ne.s32.totalorder %s105, %s107
    %p114 = scmp.eq.s32.totalorder %s15, 1
    %p115 = por %p113, %p114
    %p116 = scmp.ne.s32.totalorder %s107, %s108
    %p117 = scmp.eq.s32.totalorder %s15, 0
    %p118 = por %p116, %p117
    %p119 = scmp.ne.s32.totalorder %s107, %s108
    %p120 = scmp.eq.s32.totalorder %s16, 1
    %p121 = por %p119, %p120
    %p123 = scmp.ne.s32.totalorder %s108, %s122
    %p124 = scmp.eq.s32.totalorder %s16, 0
    %p125 = por %p123, %p124
    %s126 = ssub.s32 %s17, %s29
    %s127 = ssub.s32 %s18, %s25
    %s128 = sor.u32 %s126, %s127
    %p129 = scmp.eq.s32.totalorder %s128, 0
    %s131 = sadd.s32 %s130, 1
    %s132 = scalar_select %p129, %s130, %s131
    %p135 = pneg %p129
    %p136 = scmp.eq.s32.totalorder %s10, 1
    %p137 = por %p135, %p136
    %p138 = scmp.ne.s32.totalorder %s130, %s133
    %p139 = scmp.eq.s32.totalorder %s10, 0
    %p140 = por %p138, %p139
    %p141 = scmp.ne.s32.totalorder %s130, %s133
    %p142 = scmp.eq.s32.totalorder %s15, 1
    %p143 = por %p141, %p142
    %p144 = scmp.ne.s32.totalorder %s133, %s134
    %p145 = scmp.eq.s32.totalorder %s15, 0
    %p146 = por %p144, %p145
    %p147 = scmp.ne.s32.totalorder %s133, %s134
    %p148 = scmp.eq.s32.totalorder %s16, 1
    %p149 = por %p147, %p148
    %p151 = scmp.ne.s32.totalorder %s134, %s150
    %p152 = scmp.eq.s32.totalorder %s16, 0
    %p153 = por %p151, %p152
    %p154 = scmp.le.s32.totalorder 1, %s10
    %p155 = scmp.lt.s32.totalorder %s10, 3
    %p156 = pnand %p154, %p155
    %p157 = pneg %p156
    // Predicated region
    $region9: #{cnn_block.3} parent=5 // pred_check
      _
    $region10: #{cnn_block.3} parent=5 // pred_check_branch
      %159 = sbr.rel (%p156) target = $region12
    $region11: #{cnn_block.3} parent=5 // pred_region
      %s160 = ssub.s32 %s10, 1
      // Predicated region
      $region13: #{cnn_block.3} parent=11 // pred_check
        %p161 = pneg %p97
      $region14: #{cnn_block.3} parent=11 // pred_check_branch
        %163 = sbr.rel (%p161) target = $region16
      $region15: #{cnn_block.3} parent=11 // pred_region
        _
      $region16: #{cnn_block.3} parent=11 // pred_fallthru
        _
      // Predicated region
      $region17: #{cnn_block.3} parent=11 // pred_check
        %p164 = pneg %p118
      $region18: #{cnn_block.3} parent=11 // pred_check_branch
        %166 = sbr.rel (%p164) target = $region20
      $region19: #{cnn_block.3} parent=11 // pred_region
        _
      $region20: #{cnn_block.3} parent=11 // pred_fallthru
        _
    $region12: #{cnn_block.3} parent=5 // pred_fallthru
      _
    %p167 = scmp.lt.s32.totalorder %s10, 2
    // Predicated region
    $region21: #{cnn_block.3} parent=5 // pred_check
      %p168 = pneg %p167
    $region22: #{cnn_block.3} parent=5 // pred_check_branch
      %170 = sbr.rel (%p168) target = $region24
    $region23: #{cnn_block.3} parent=5 // pred_region
      // Predicated region
      $region25: #{cnn_block.3} parent=23 // pred_check
        %p171 = pneg %p44
      $region26: #{cnn_block.3} parent=23 // pred_check_branch
        %173 = sbr.rel (%p171) target = $region28
      $region27: #{cnn_block.3} parent=23 // pred_region
        %s174 = smul.u32 7, %s18
        %p175 = scmp.lt.s32.totalorder %s17, 1
        %s176 = scalar_select %p175, %s17, 1
        %p177 = scmp.lt.s32.totalorder %s174, 6
        %s178 = scalar_select %p177, %s174, 6
        %s179 = smul.addr %s176, 7
        %s180 = sadd.s32 %s178, %s179
        %s181 = smul.addr %s180, 8
        %s182 = scalar_lea.vmem %s0, %s181
        %s183 = smul.u32 7, %s18
      $region28: #{cnn_block.3} parent=23 // pred_fallthru
        _
      // Predicated region
      $region29: #{cnn_block.3} parent=23 // pred_check
        %p184 = pneg %p70
      $region30: #{cnn_block.3} parent=23 // pred_check_branch
        %186 = sbr.rel (%p184) target = $region32
      $region31: #{cnn_block.3} parent=23 // pred_region
        %p187 = scmp.lt.s32.totalorder %s17, 1
        %s188 = scalar_select %p187, %s17, 1
        %s189 = smul.addr %s188, 2
        %s190 = scalar_lea.vmem %s1, %s189
      $region32: #{cnn_block.3} parent=23 // pred_fallthru
        _
    $region24: #{cnn_block.3} parent=5 // pred_fallthru
      _
    %p191 = scmp.le.s32.totalorder 1, %s10
    %p192 = scmp.lt.s32.totalorder %s10, 3
    %p193 = pnand %p191, %p192
    %p194 = pneg %p193
    // Predicated region
    $region33: #{cnn_block.3} parent=5 // pred_check
      _
    $region34: #{cnn_block.3} parent=5 // pred_check_branch
      %196 = sbr.rel (%p193) target = $region36
    $region35: #{cnn_block.3} parent=5 // pred_region
      %s197 = ssub.s32 %s10, 1
      %s198 = smul.u32 7, %s20
      %p199 = scmp.lt.s32.totalorder %s19, 1
      %s200 = scalar_select %p199, %s19, 1
      %p201 = scmp.lt.s32.totalorder %s198, 6
      %s202 = scalar_select %p201, %s198, 6
      %s203 = smul.addr %s200, 7
      %s204 = sadd.s32 %s202, %s203
      %s205 = smul.addr %s204, 8
      %s206 = scalar_lea.vmem %s0, %s205
      %p207 = pneg %p50
      %p208 = pneg %p47
      %p209 = scmp.lt.s32.totalorder %s19, 1
      %s210 = scalar_select %p209, %s19, 1
      %s211 = smul.addr %s210, 2
      %s212 = scalar_lea.vmem %s1, %s211
      %p213 = pneg %p76
      %p214 = pneg %p73
      %p215 = pneg %p97
      %p216 = pneg %p94
      %p217 = pneg %p118
      %p218 = pneg %p115
      %p219 = pneg %p146
      %p220 = pneg %p143
      %s221 = smul.u32 7, %s20
      %p222 = scmp.lt.s32.totalorder %s19, 1
      %s223 = scalar_select %p222, %s19, 1
      %p224 = scmp.lt.s32.totalorder %s221, 6
      %s225 = scalar_select %p224, %s221, 6
      %s226 = smul.addr %s223, 7
      %s227 = sadd.s32 %s225, %s226
      %s228 = smul.addr %s227, 8
      %s229 = scalar_lea.vmem %s4, %s228
      %s230 = smul.u32 7, %s20
      %p231 = scmp.lt.s32.totalorder %s19, 1
      %s232 = scalar_select %p231, %s19, 1
      %p233 = scmp.lt.s32.totalorder %s230, 6
      %s234 = scalar_select %p233, %s230, 6
      %s235 = smul.addr %s232, 7
      %s236 = sadd.s32 %s234, %s235
      %s237 = smul.addr %s236, 8
      %s238 = scalar_lea.vmem %s0, %s237
      %s239 = smul.u32 7, %s20
      %p240 = scmp.lt.s32.totalorder %s19, 1
      %s241 = scalar_select %p240, %s19, 1
      %s242 = smul.addr %s241, 2
      %s243 = scalar_lea.vmem %s1, %s242
      %s244 = smul.u32 7, %s20
      %p245 = scmp.lt.s32.totalorder %s19, 1
      %s246 = scalar_select %p245, %s19, 1
      %p247 = scmp.lt.s32.totalorder %s244, 6
      %s248 = scalar_select %p247, %s244, 6
      %s249 = smul.addr %s246, 7
      %s250 = sadd.s32 %s248, %s249
      %s251 = smul.addr %s250, 8
      %s252 = scalar_lea.vmem %s4, %s251
      %s253 = smul.u32 7, %s20
      %v254 = vld [vmem:[%s243] sm:$0x3]
      %v255 = vmul.f32 %v254, 0.020408163
      %v256 = vmul.f32 %v255, %v255
      %v258 = vrot.slane %v256, 7
      %v260 = vsub.f32 %v255, %v258
      %v261 = vmax.f32 %v260, 0.0
      %v262 = vadd.f32 %v261, 1e-05
      %v263 = vrsqrt.pop %v262
      %v264 = vld [vmem:[%s2] sm:$0x1]
      %v267 = vunpack.c.l.s4 1966171168
      %v268 = vunpack.c.0.s8 %v267
      %v269 = vlaneseq
      %v270 = vshrl.u32 %v269, 7
      %v271 = vsub.s32 %v268, %v270
      %v272 = vrot.slane %v263, %v271
      %v273 = vcombine.high %v272, %v272
      %v275 = vunpack.c.l.s4 1966171168
      %v276 = vunpack.c.0.s8 %v275
      %v277 = vlaneseq
      %v278 = vshrl.u32 %v277, 7
      %v279 = vsub.s32 %v276, %v278
      %v280 = vrot.slane %v273, %v279
      %v282 = vmul.f32 %v264, %v280
      %v283 = vld [vmem:[%s3] sm:$0x1]
      %v284 = vmul.f32 %v255, %v282
      %v285 = vsub.f32 %v283, %v284
      %v286 = vld [vmem:[%s238] sm:$0xff]
      %v287 = vld [vmem:[%s238 + $0x8] sm:$0xff]
      %v288 = vld [vmem:[%s238 + $0x10] sm:$0xff]
      %v289 = vld [vmem:[%s238 + $0x18] sm:$0xff]
      %v290 = vld [vmem:[%s238 + $0x20] sm:$0xff]
      %v291 = vld [vmem:[%s238 + $0x28] sm:$0xff]
      %v292 = vld [vmem:[%s238 + $0x30] sm:$0xff]
      %v294 = vlaneseq
      %v295 = vshrl.u32 %v294, 7
      %v296 = vsub.s32 0, %v295
      %v297 = vrot.slane %v282, %v296
      %v299 = vmul.f32 %v286, %v297
      %v300 = vmul.f32 %v287, %v297
      %v301 = vmul.f32 %v288, %v297
      %v302 = vmul.f32 %v289, %v297
      %v303 = vmul.f32 %v290, %v297
      %v304 = vmul.f32 %v291, %v297
      %v305 = vmul.f32 %v292, %v297
      %v307 = vlaneseq
      %v308 = vshrl.u32 %v307, 7
      %v309 = vsub.s32 0, %v308
      %v310 = vrot.slane %v285, %v309
      %v312 = vadd.f32 %v299, %v310
      %v313 = vadd.f32 %v300, %v310
      %v314 = vadd.f32 %v301, %v310
      %v315 = vadd.f32 %v302, %v310
      %v316 = vadd.f32 %v303, %v310
      %v317 = vadd.f32 %v304, %v310
      %v318 = vadd.f32 %v305, %v310
      %vm319 = vcmp.ge.f32.partialorder %v312, 0.0
      %vm320 = vcmp.ge.f32.partialorder %v313, 0.0
      %vm321 = vcmp.ge.f32.partialorder %v314, 0.0
      %vm322 = vcmp.ge.f32.partialorder %v315, 0.0
      %vm323 = vcmp.ge.f32.partialorder %v316, 0.0
      %vm324 = vcmp.ge.f32.partialorder %v317, 0.0
      %vm325 = vcmp.ge.f32.partialorder %v318, 0.0
      %v326 = vmul.f32 %v312, 0.2
      %v327 = vmul.f32 %v313, 0.2
      %v328 = vmul.f32 %v314, 0.2
      %v329 = vmul.f32 %v315, 0.2
      %v330 = vmul.f32 %v316, 0.2
      %v331 = vmul.f32 %v317, 0.2
      %v332 = vmul.f32 %v318, 0.2
      %v333 = vsel %vm319, %v312, %v326
      %v334 = vsel %vm320, %v313, %v327
      %v335 = vsel %vm321, %v314, %v328
      %v336 = vsel %vm322, %v315, %v329
      %v337 = vsel %vm323, %v316, %v330
      %v338 = vsel %vm324, %v317, %v331
      %v339 = vsel %vm325, %v318, %v332
      %340 = vst [vmem:[%s252] sm:$0xff] %v333
      %341 = vst [vmem:[%s252 + $0x8] sm:$0xff] %v334
      %342 = vst [vmem:[%s252 + $0x10] sm:$0xff] %v335
      %343 = vst [vmem:[%s252 + $0x18] sm:$0xff] %v336
      %344 = vst [vmem:[%s252 + $0x20] sm:$0xff] %v337
      %345 = vst [vmem:[%s252 + $0x28] sm:$0xff] %v338
      %346 = vst [vmem:[%s252 + $0x30] sm:$0xff] %v339
      %s347 = smul.u32 7, %s20
      %p348 = scmp.lt.s32.totalorder %s19, 1
      %s349 = scalar_select %p348, %s19, 1
      %p350 = scmp.lt.s32.totalorder %s347, 6
      %s351 = scalar_select %p350, %s347, 6
      %s352 = smul.addr %s349, 7
      %s353 = sadd.s32 %s351, %s352
      %s354 = smul.addr %s353, 8
      %s355 = scalar_lea.vmem %s4, %s354
      // Predicated region
      $region37: #{cnn_block.3} parent=35 // pred_check
        %p356 = pneg %p143
      $region38: #{cnn_block.3} parent=35 // pred_check_branch
        %358 = sbr.rel (%p356) target = $region40
      $region39: #{cnn_block.3} parent=35 // pred_region
        %s359 = smul.u32 7, %s20
      $region40: #{cnn_block.3} parent=35 // pred_fallthru
        _
    $region36: #{cnn_block.3} parent=5 // pred_fallthru
      _
    %p360 = scmp.le.s32.totalorder 2, %s10
    // Predicated region
    $region41: #{cnn_block.3} parent=5 // pred_check
      %p361 = pneg %p360
    $region42: #{cnn_block.3} parent=5 // pred_check_branch
      %363 = sbr.rel (%p361) target = $region44
    $region43: #{cnn_block.3} parent=5 // pred_region
      %s364 = ssub.s32 %s10, 2
      // Predicated region
      $region45: #{cnn_block.3} parent=43 // pred_check
        %p365 = pneg %p149
      $region46: #{cnn_block.3} parent=43 // pred_check_branch
        %367 = sbr.rel (%p365) target = $region48
      $region47: #{cnn_block.3} parent=43 // pred_region
        %s368 = smul.u32 7, %s22
        %p369 = scmp.lt.s32.totalorder %s21, 1
        %s370 = scalar_select %p369, %s21, 1
        %p371 = scmp.lt.s32.totalorder %s368, 6
        %s372 = scalar_select %p371, %s368, 6
        %s373 = smul.addr %s370, 7
        %s374 = sadd.s32 %s372, %s373
        %s375 = smul.addr %s374, 8
        %s376 = scalar_lea.vmem %s4, %s375
      $region48: #{cnn_block.3} parent=43 // pred_fallthru
        _
    $region44: #{cnn_block.3} parent=5 // pred_fallthru
      _
  $region6: #{cnn_block.3} parent=0 // loop_footer
    %s14 = sadd.s32 1, %s10
  $region7: #{cnn_block.3} parent=0 // loop_footer_branch
    %9 = sbr.rel target = $region3
  $region8: #{cnn_block.3} parent=0 // loop_exit
    _

</llo_original>
